<compile_context>
chip_gen: v5e
topology: v5e:2x2
jax: 0.10.0
libtpu: 0.0.40
codegen_flags: <defaults>
</compile_context>

<pallas_src>
import jax
import jax.numpy as jnp
from jax.experimental import pallas as pl
from jax.experimental.pallas import tpu as pltpu

IN_FEATURES = 3
OUT_FEATURES = 3

_DEFAULT_BATCH_TILE = 2048   # rows per grid step (≈2 MiB VMEM per buffer incl. lane padding)
_PALLAS_MIN_BATCH = 1024     # below this, a plain XLA dot is strictly faster


def _linear_kernel(x_ref, wt_ref, b_ref, o_ref):
    # x_ref : (TB, 3) f32   current batch tile
    # wt_ref: (3, 3)  f32   W^T  (wt[k, j] == weight[j, k])
    # b_ref : (1, 3)  f32   bias row
    # o_ref : (TB, 3) f32
    x = x_ref[...]
    # o[:, j] = sum_k x[:, k] * weight[j, k] + b[j]  -> 3 broadcast FMAs on the VPU.
    acc = b_ref[...] + x[:, 0:1] * wt_ref[0:1, :]
    acc = acc + x[:, 1:2] * wt_ref[1:2, :]
    acc = acc + x[:, 2:3] * wt_ref[2:3, :]
    o_ref[...] = acc.astype(o_ref.dtype)


def linear_pallas(x, weight, bias, *, batch_tile=_DEFAULT_BATCH_TILE):
    """Compute x @ weight.T + bias with a Pallas TPU kernel.

    x:      (batch, IN_FEATURES) float32
    weight: (OUT_FEATURES, IN_FEATURES) float32   (PyTorch convention)
    bias:   (OUT_FEATURES,) float32
    returns (batch, OUT_FEATURES) float32
    """
    batch = x.shape[0]
    # Batch tile: whole batch if it fits in one tile (block == full array is
    # always legal), otherwise a multiple-of-8 tile; edge blocks are handled
    # by Pallas (rows are independent, so masked boundary writes are exact).
    if batch <= batch_tile:
        tb = batch
    else:
        tb = batch_tile
    grid = (pl.cdiv(batch, tb),)

    wt = weight.T.astype(jnp.float32)                     # (3, 3)  = W^T
    b2 = bias.reshape(1, OUT_FEATURES).astype(jnp.float32)  # (1, 3)

    return pl.pallas_call(
        _linear_kernel,
        out_shape=jax.ShapeDtypeStruct((batch, OUT_FEATURES), jnp.float32),
        grid=grid,
        in_specs=[
            pl.BlockSpec((tb, IN_FEATURES), lambda i: (i, 0)),
            pl.BlockSpec((IN_FEATURES, OUT_FEATURES), lambda i: (0, 0)),  # loop-invariant
            pl.BlockSpec((1, OUT_FEATURES), lambda i: (0, 0)),            # loop-invariant
        ],
        out_specs=pl.BlockSpec((tb, OUT_FEATURES), lambda i: (i, 0)),
        compiler_params=pltpu.CompilerParams(
            dimension_semantics=("parallel",),       # 2 TCs on v7x split the batch tiles
            vmem_limit_bytes=16 * 1024 * 1024,       # safe on v5e/v6e/v7x defaults
        ),
    )(x.astype(jnp.float32), wt, b2)


def linear(x, weight, bias):
    """Classifiermodel.forward. Falls back to plain XLA for tiny batches where
    pallas_call launch/DMA overhead dominates the ~nanoseconds of real work."""
    if x.shape[0] < _PALLAS_MIN_BATCH:
        return x @ weight.T + bias
    return linear_pallas(x, weight, bias)


def init_params(key):
    """Deterministic init mimicking nn.Linear's kaiming-uniform bounds."""
    k_w, k_b = jax.random.split(key)
    bound = 1.0 / jnp.sqrt(IN_FEATURES)
    weight = jax.random.uniform(k_w, (OUT_FEATURES, IN_FEATURES), jnp.float32,
                                minval=-bound, maxval=bound)
    bias = jax.random.uniform(k_b, (OUT_FEATURES,), jnp.float32,
                              minval=-bound, maxval=bound)
    return weight, bias


if __name__ == "__main__":
    key = jax.random.PRNGKey(0)
    k_x, k_p = jax.random.split(key)

    batch = 8
    x = jax.random.normal(k_x, (batch, IN_FEATURES), jnp.float32)
    weight, bias = init_params(k_p)

    # Exercise the Pallas kernel directly (bypassing the small-batch fallback).
    y = linear_pallas(x, weight, bias)
    jax.block_until_ready(y)

    # Reference check against plain JAX.
    y_ref = x @ weight.T + bias
    assert y.shape == (batch, OUT_FEATURES)
    assert jnp.allclose(y, y_ref, atol=1e-5, rtol=1e-5)

    # Gated wrapper (uses the XLA path at this batch size) must agree too.
    y2 = linear(x, weight, bias)
    assert jnp.allclose(y2, y_ref, atol=1e-5, rtol=1e-5)

    print("KERNEL_OK")
</pallas_src>

<mosaic_0001>
module attributes {stable_mosaic.version = 11 : i64} {
  func.func @_linear_kernel(%arg0: i32, %arg1: memref<8x3xf32, #tpu.memory_space<vmem>>, %arg2: memref<3x3xf32, #tpu.memory_space<vmem>>, %arg3: memref<1x3xf32, #tpu.memory_space<vmem>>, %arg4: memref<8x3xf32, #tpu.memory_space<vmem>>) attributes {dimension_semantics = [#tpu.dimension_semantics<parallel>], iteration_bounds = array<i64: 1>, scalar_prefetch = 0 : i64, scratch_operands = 0 : i64, tpu.core_type = #tpu.core_type<tc>, window_params = [{transform_indices = @transform_0, window_bounds = array<i64: 8, 3>}, {pipeline_mode = #tpu.pipeline_mode<synchronous>, transform_indices = @transform_1, window_bounds = array<i64: 3, 3>}, {pipeline_mode = #tpu.pipeline_mode<synchronous>, transform_indices = @transform_2, window_bounds = array<i64: 1, 3>}, {transform_indices = @transform_3, window_bounds = array<i64: 8, 3>}]} {
    %c0 = arith.constant 0 : index
    %c0_0 = arith.constant 0 : index
    %0 = vector.load %arg1[%c0, %c0_0] : memref<8x3xf32, #tpu.memory_space<vmem>>, vector<8x3xf32>
    %c0_1 = arith.constant 0 : index
    %c0_2 = arith.constant 0 : index
    %1 = vector.load %arg3[%c0_1, %c0_2] : memref<1x3xf32, #tpu.memory_space<vmem>>, vector<1x3xf32>
    %2 = vector.extract_strided_slice %0 {offsets = [0, 0], sizes = [8, 1], strides = [1, 1]} : vector<8x3xf32> to vector<8x1xf32>
    %c0_3 = arith.constant 0 : index
    %c0_4 = arith.constant 0 : index
    %3 = vector.load %arg2[%c0_3, %c0_4] : memref<3x3xf32, #tpu.memory_space<vmem>>, vector<1x3xf32>
    %4 = vector.broadcast %2 : vector<8x1xf32> to vector<8x3xf32>
    %5 = vector.broadcast %3 : vector<1x3xf32> to vector<8x3xf32>
    %6 = arith.mulf %4, %5 : vector<8x3xf32>
    %7 = vector.broadcast %1 : vector<1x3xf32> to vector<8x3xf32>
    %8 = arith.addf %7, %6 : vector<8x3xf32>
    %9 = vector.extract_strided_slice %0 {offsets = [0, 1], sizes = [8, 1], strides = [1, 1]} : vector<8x3xf32> to vector<8x1xf32>
    %c1 = arith.constant 1 : index
    %c0_5 = arith.constant 0 : index
    %10 = vector.load %arg2[%c1, %c0_5] : memref<3x3xf32, #tpu.memory_space<vmem>>, vector<1x3xf32>
    %11 = vector.broadcast %9 : vector<8x1xf32> to vector<8x3xf32>
    %12 = vector.broadcast %10 : vector<1x3xf32> to vector<8x3xf32>
    %13 = arith.mulf %11, %12 : vector<8x3xf32>
    %14 = arith.addf %8, %13 : vector<8x3xf32>
    %15 = vector.extract_strided_slice %0 {offsets = [0, 2], sizes = [8, 1], strides = [1, 1]} : vector<8x3xf32> to vector<8x1xf32>
    %c2 = arith.constant 2 : index
    %c0_6 = arith.constant 0 : index
    %16 = vector.load %arg2[%c2, %c0_6] : memref<3x3xf32, #tpu.memory_space<vmem>>, vector<1x3xf32>
    %17 = vector.broadcast %15 : vector<8x1xf32> to vector<8x3xf32>
    %18 = vector.broadcast %16 : vector<1x3xf32> to vector<8x3xf32>
    %19 = arith.mulf %17, %18 : vector<8x3xf32>
    %20 = arith.addf %14, %19 : vector<8x3xf32>
    %c0_7 = arith.constant 0 : index
    %c0_8 = arith.constant 0 : index
    %21 = vector.load %arg4[%c0_7, %c0_8] : memref<8x3xf32, #tpu.memory_space<vmem>>, vector<8x3xf32>
    tpu.vector_store %arg4[%c0_7, %c0_8], %20 {strides = array<i32>} : memref<8x3xf32, #tpu.memory_space<vmem>>, vector<8x3xf32>,
    return
  }
  func.func @transform_0(%arg0: i32) -> (i32, i32) {
    %c0_i32 = arith.constant 0 : i32
    %c0_i32_0 = arith.constant 0 : i32
    return %arg0, %c0_i32 : i32, i32
  }
  func.func @transform_1(%arg0: i32) -> (i32, i32) {
    %c0_i32 = arith.constant 0 : i32
    %c0_i32_0 = arith.constant 0 : i32
    %c0_i32_1 = arith.constant 0 : i32
    return %c0_i32, %c0_i32_0 : i32, i32
  }
  func.func @transform_2(%arg0: i32) -> (i32, i32) {
    %c0_i32 = arith.constant 0 : i32
    %c0_i32_0 = arith.constant 0 : i32
    %c0_i32_1 = arith.constant 0 : i32
    return %c0_i32, %c0_i32_0 : i32, i32
  }
  func.func @transform_3(%arg0: i32) -> (i32, i32) {
    %c0_i32 = arith.constant 0 : i32
    %c0_i32_0 = arith.constant 0 : i32
    return %arg0, %c0_i32 : i32, i32
  }
}

</mosaic_0001>

<llo_original>
// kernel: tpu_custom_call.1
$region0: #{tpu_custom_call.1}
  #allocation0 [shape = 'u32[]', space=smem, size = 0x4, offset = 0x4, fixed_abs, tag = 'smem constant byte address 0x4 - core index']
  #allocation1 [shape = 'u32[72,128]{1,0:T(1,128)}', space=vmem, size = 0x9000, scoped, tag = 'internal scratch']
  %s0 = inlined_call_operand.vmem [shape: f32[8,3], index: 0, kind: input, shape index: {}]
  %s1 = inlined_call_operand.vmem [shape: f32[3,3], index: 1, kind: input, shape index: {}]
  %s2 = inlined_call_operand.vmem [shape: f32[1,3], index: 2, kind: input, shape index: {}]
  %s3 = inlined_call_operand.vmem [shape: f32[8,3], index: 3, kind: output, shape index: {}]
  %s4 = sld [smem:[#allocation0]]
  $region22: #{tpu_custom_call.1} parent=0
    _
  %s6 = ssub.s32 1, %s4
  %s7 = scalar_select 0, %s6, %s4
  // Predicated region
  $region2: #{tpu_custom_call.1} parent=0 // pred_check
    _
  $region3: #{tpu_custom_call.1} parent=0 // pred_check_branch
    %9 = sbr.rel (0) target = $region5
  $region4: #{tpu_custom_call.1} parent=0 // pred_region
    _
  $region5: #{tpu_custom_call.1} parent=0 // pred_fallthru
    _
  // Predicated region
  $region6: #{tpu_custom_call.1} parent=0 // pred_check
    _
  $region7: #{tpu_custom_call.1} parent=0 // pred_check_branch
    %11 = sbr.rel (0) target = $region9
  $region8: #{tpu_custom_call.1} parent=0 // pred_region
    _
  $region9: #{tpu_custom_call.1} parent=0 // pred_fallthru
    _
  // Predicated region
  $region10: #{tpu_custom_call.1} parent=0 // pred_check
    _
  $region11: #{tpu_custom_call.1} parent=0 // pred_check_branch
    %13 = sbr.rel (0) target = $region13
  $region12: #{tpu_custom_call.1} parent=0 // pred_region
    _
  $region13: #{tpu_custom_call.1} parent=0 // pred_fallthru
    _
  %v14 = vld [vmem:[%s0] sm:$0xff]
  %v15 = vld [vmem:[%s2] sm:$0x1]
  %v16 = vld [vmem:[%s1] sm:$0x1]
  %18 = vset.pattern.permute.xlu0 0
  %19 = vperm.xlu0 %18, %v14
  %v20 = vpop.permute.xlu0 %19
  %v22 = vperm.slane %v16, 0
  %v23 = vmul.f32 %v20, %v22
  %v25 = vperm.slane %v15, 0
  %v27 = vadd.f32 %v25, %v23
  %v28 = vld [vmem:[%s1 + $0x1] sm:$0x1]
  %29 = vset.pattern.permute.xlu0 1
  %30 = vperm.xlu0 %29, %v14
  %v31 = vpop.permute.xlu0 %30
  %v33 = vperm.slane %v28, 0
  %v34 = vmul.f32 %v31, %v33
  %v35 = vadd.f32 %v27, %v34
  %v36 = vld [vmem:[%s1 + $0x2] sm:$0x1]
  %37 = vset.pattern.permute.xlu0 2
  %38 = vperm.xlu0 %37, %v14
  %v39 = vpop.permute.xlu0 %38
  %v41 = vperm.slane %v36, 0
  %v42 = vmul.f32 %v39, %v41
  %v43 = vadd.f32 %v35, %v42
  %vm44 = vcmask 23552
  %45 = vst.msk [vmem:[%s3] sm:$0xff] %vm44, %v43
  // Predicated region
  $region14: #{tpu_custom_call.1} parent=0 // pred_check
    _
  $region15: #{tpu_custom_call.1} parent=0 // pred_check_branch
    %47 = sbr.rel (0) target = $region17
  $region16: #{tpu_custom_call.1} parent=0 // pred_region
    _
  $region17: #{tpu_custom_call.1} parent=0 // pred_fallthru
    _
  // Predicated region
  $region18: #{tpu_custom_call.1} parent=0 // pred_check
    _
  $region19: #{tpu_custom_call.1} parent=0 // pred_check_branch
    %49 = sbr.rel (0) target = $region21
  $region20: #{tpu_custom_call.1} parent=0 // pred_region
    _
  $region21: #{tpu_custom_call.1} parent=0 // pred_fallthru
    _

</llo_original>
